<compile_context>
chip_gen: v5e
topology: v5e:2x2
jax: 0.10.0
libtpu: 0.0.40
codegen_flags: <defaults>
</compile_context>

<pallas_src>
import jax
import jax.numpy as jnp
from jax import lax
from jax.experimental import pallas as pl
from jax.experimental.pallas import tpu as pltpu


def linear_kernel(x_ref, w_ref, b_ref, o_ref):
    x = x_ref[...]                      # (TB, IN)   f32
    w = w_ref[...]                      # (OUT, IN)  f32 (torch layout)
    # out[o, t] = sum_k w[o, k] * x[t, k]  ->  lane-dense (OUT, TB) result.
    # The kernel is HBM-bound; this tiny M=1, K=10 matmul is nowhere near the
    # critical path, and with row-major x a VPU reduce would need its own
    # sublane->lane relayout, so the MXU form is kept.
    y = lax.dot_general(
        w, x,
        dimension_numbers=(((1,), (1,)), ((), ())),
        preferred_element_type=jnp.float32,
    )                                   # (OUT, TB)
    # OUT == 1, so a single SMEM scalar bias covers the (only) output row.
    o_ref[...] = (y + b_ref[0]).astype(o_ref.dtype)


def _default_block_b():
    """Generation-dependent batch tile (rows), always a multiple of 128."""
    try:
        kind = jax.devices()[0].device_kind.lower()
    except Exception:
        kind = ""
    if "v7" in kind or "7x" in kind:
        return 24576        # ~3.2 TB/s HBM -> ~1 MB useful bytes per step
    if "v6" in kind:
        return 12288        # ~1.3-1.4 TB/s -> ~0.5 MB per step
    return 8192             # v5e and older/unknown: ~0.3 MB per step


def simple_nn_forward(x, weight, bias, *, block_b=None, min_pallas_batch=1024):
    """Forward pass of SimpleNN: y = x @ weight.T + bias.

    x: (B, 10) f32; weight: (1, 10) f32 (torch layout); bias: (1,) f32.
    Returns (B, 1) f32, identical to nn.Linear(10, 1)(x).
    """
    B, IN = x.shape
    OUT, IN_w = weight.shape
    assert IN == IN_w and bias.shape == (OUT,)
    assert OUT == 1  # kernel's scalar bias add assumes a single output row

    # Tiny batches: kernel dispatch overhead dominates; compute inline.
    if B < min_pallas_batch:
        return x @ weight.T + bias

    if block_b is None:
        block_b = _default_block_b()

    # Batch tile: multiple of 128 so the lane-dense output block is unmasked.
    TB = min(block_b, pl.cdiv(B, 128) * 128)
    # Prefer >= 2 grid steps so v7x's two TensorCores both get work and the
    # input DMA has something to overlap with (neutral on single-TC chips).
    if B > 2 * 128 and pl.cdiv(B, TB) < 2:
        TB = pl.cdiv(pl.cdiv(B, 2), 128) * 128
    grid = pl.cdiv(B, TB)

    # VMEM budget: x tiles lane-pad 10 -> 128 and are double-buffered; output
    # tiles sublane-pad 1 -> 8 and are double-buffered; plus headroom for the
    # resident weight and Mosaic internal scratch.
    vmem_needed = 2 * TB * 128 * 4 + 2 * 8 * TB * 4 + (8 << 20)
    vmem_limit = min(max(vmem_needed, 32 << 20), 56 << 20)

    out_t = pl.pallas_call(
        linear_kernel,
        out_shape=jax.ShapeDtypeStruct((OUT, B), x.dtype),
        grid=(grid,),
        in_specs=[
            pl.BlockSpec((TB, IN), lambda i: (i, 0)),            # x batch tile
            pl.BlockSpec((OUT, IN), lambda i: (0, 0)),           # weight (resident)
            pl.BlockSpec(memory_space=pltpu.MemorySpace.SMEM),   # bias scalar
        ],
        out_specs=pl.BlockSpec((OUT, TB), lambda i: (0, i)),     # lane-dense
        compiler_params=pltpu.CompilerParams(
            dimension_semantics=("parallel",),
            vmem_limit_bytes=vmem_limit,
        ),
    )(x, weight, bias)                   # (OUT, B)

    return out_t[0, :][:, None]          # back to torch's (B, OUT=1)


if __name__ == "__main__":
    key = jax.random.PRNGKey(0)
    k_w, k_b, k_x1, k_x2, k_x3 = jax.random.split(key, 5)

    IN, OUT = 10, 1
    # Deterministic init mimicking torch's uniform(-1/sqrt(in), 1/sqrt(in)).
    bound = 1.0 / jnp.sqrt(jnp.float32(IN))
    weight = jax.random.uniform(k_w, (OUT, IN), jnp.float32, -bound, bound)
    bias = jax.random.uniform(k_b, (OUT,), jnp.float32, -bound, bound)

    # 1) Tiny batch (module-scale input) -> jnp fast path.
    x1 = jax.random.normal(k_x1, (8, IN), dtype=jnp.float32)
    out1 = simple_nn_forward(x1, weight, bias)
    jax.block_until_ready(out1)
    ref1 = x1 @ weight.T + bias
    assert out1.shape == (8, OUT)
    assert jnp.allclose(out1, ref1, atol=1e-5, rtol=1e-5)

    # 2) Batch large enough for the Pallas path (2-step grid, resident weight).
    x2 = jax.random.normal(k_x2, (2048, IN), dtype=jnp.float32)
    out2 = simple_nn_forward(x2, weight, bias)
    jax.block_until_ready(out2)
    ref2 = x2 @ weight.T + bias
    assert out2.shape == (2048, OUT)
    assert jnp.allclose(out2, ref2, atol=1e-5, rtol=1e-5)

    # 3) Ragged batch: multi-step grid with a partial (masked) last block,
    #    no wrapper-side padding.
    x3 = jax.random.normal(k_x3, (3000, IN), dtype=jnp.float32)
    out3 = simple_nn_forward(x3, weight, bias, block_b=1024)
    jax.block_until_ready(out3)
    ref3 = x3 @ weight.T + bias
    assert out3.shape == (3000, OUT)
    assert jnp.allclose(out3, ref3, atol=1e-5, rtol=1e-5)

    print("KERNEL_OK")
</pallas_src>

<mosaic_0001>
module attributes {stable_mosaic.version = 11 : i64} {
  func.func @linear_kernel(%arg0: i32, %arg1: memref<1024x10xf32, #tpu.memory_space<vmem>>, %arg2: memref<1x10xf32, #tpu.memory_space<vmem>>, %arg3: memref<1xf32, #tpu.memory_space<smem>>, %arg4: memref<1x1024xf32, #tpu.memory_space<vmem>>) attributes {dimension_semantics = [#tpu.dimension_semantics<parallel>], iteration_bounds = array<i64: 2>, scalar_prefetch = 0 : i64, scratch_operands = 0 : i64, tpu.core_type = #tpu.core_type<tc>, window_params = [{transform_indices = @transform_0, window_bounds = array<i64: 1024, 10>}, {pipeline_mode = #tpu.pipeline_mode<synchronous>, transform_indices = @transform_1, window_bounds = array<i64: 1, 10>}, {transform_indices = @transform_2, window_bounds = array<i64: 1>}, {transform_indices = @transform_3, window_bounds = array<i64: 1, 1024>}]} {
    %c0 = arith.constant 0 : index
    %c0_0 = arith.constant 0 : index
    %0 = vector.load %arg1[%c0, %c0_0] : memref<1024x10xf32, #tpu.memory_space<vmem>>, vector<1024x10xf32>
    %c0_1 = arith.constant 0 : index
    %c0_2 = arith.constant 0 : index
    %1 = vector.load %arg2[%c0_1, %c0_2] : memref<1x10xf32, #tpu.memory_space<vmem>>, vector<1x10xf32>
    %cst = arith.constant dense<0.000000e+00> : vector<1x1024xf32>
    %2 = tpu.matmul %1, %0, %cst {dimension_numbers = #tpu.dot_dimension_numbers<[1], [1], [0], [0], [0, 0, 1, 0], [], []>} : vector<1x10xf32>, vector<1024x10xf32>, vector<1x1024xf32> -> vector<1x1024xf32>
    %c0_3 = arith.constant 0 : index
    %3 = memref.load %arg3[%c0_3] : memref<1xf32, #tpu.memory_space<smem>>
    %4 = vector.broadcast %3 : f32 to vector<1x1024xf32>
    %5 = arith.addf %2, %4 : vector<1x1024xf32>
    %c0_4 = arith.constant 0 : index
    %c0_5 = arith.constant 0 : index
    %6 = vector.load %arg4[%c0_4, %c0_5] : memref<1x1024xf32, #tpu.memory_space<vmem>>, vector<1x1024xf32>
    tpu.vector_store %arg4[%c0_4, %c0_5], %5 {strides = array<i32>} : memref<1x1024xf32, #tpu.memory_space<vmem>>, vector<1x1024xf32>,
    return
  }
  func.func @transform_0(%arg0: i32) -> (i32, i32) {
    %c0_i32 = arith.constant 0 : i32
    %c0_i32_0 = arith.constant 0 : i32
    return %arg0, %c0_i32 : i32, i32
  }
  func.func @transform_1(%arg0: i32) -> (i32, i32) {
    %c0_i32 = arith.constant 0 : i32
    %c0_i32_0 = arith.constant 0 : i32
    %c0_i32_1 = arith.constant 0 : i32
    return %c0_i32, %c0_i32_0 : i32, i32
  }
  func.func @transform_2(%arg0: i32) -> i32 {
    %c0_i32 = arith.constant 0 : i32
    %c0_i32_0 = arith.constant 0 : i32
    return %c0_i32 : i32
  }
  func.func @transform_3(%arg0: i32) -> (i32, i32) {
    %c0_i32 = arith.constant 0 : i32
    %c0_i32_0 = arith.constant 0 : i32
    return %c0_i32, %arg0 : i32, i32
  }
}

</mosaic_0001>

<llo_original>
// kernel: tpu_custom_call.1
$region0: #{tpu_custom_call.1}
  #allocation0 [shape = 'u32[]', space=smem, size = 0x4, offset = 0x4, fixed_abs, tag = 'smem constant byte address 0x4 - core index']
  #allocation1 [shape = 'u32[72,128]{1,0:T(1,128)}', space=vmem, size = 0x9000, scoped, tag = 'internal scratch']
  #allocation2 [shape = 'f32[1]{0:T(128)S(6)}', space=smem, size = 0x200, scoped, tag = 'scoped memory for tpu_custom_call.1']
  %s0 = inlined_call_operand.vmem [shape: f32[2048,10], index: 0, kind: input, shape index: {}]
  %s1 = inlined_call_operand.vmem [shape: f32[1,10], index: 1, kind: input, shape index: {}]
  %s2 = inlined_call_operand.<no memory space> [shape: f32[1], index: 2, kind: input, shape index: {}]
  %s3 = inlined_call_operand.hbm [shape: f32[1,2048], index: 3, kind: output, shape index: {}]
  %s4 = sld [smem:[#allocation0]]
  $region45: #{tpu_custom_call.1} parent=0
    _
  %s6 = ssub.s32 1, %s4
  %s7 = scalar_select 0, %s6, %s4
  %8 = sst [smem:[#allocation2]] %s2
  $region1: #{tpu_custom_call.1} parent=0
    #allocation3 [shape = 'u8[8192]{0}', space=vmem, size = 0x2000, scoped, tag = 'output window, operand 0']
    #allocation4 [shape = 's32[2]{0}', space=sflag, size = 0x8, scoped, tag = 'scoped memory for tpu_custom_call.1']
    %9 = vsyncpa [#allocation4], 0
    %s10 = scalar_lea.sflag [#allocation4], 1
    %11 = vsyncpa %s10, 0
    loop: start=0, step=1, limit=4
    $region2: #{tpu_custom_call.1} parent=1 // loop_pre_header
      _
    $region3: #{tpu_custom_call.1} parent=1 // loop_header
      %s13 = sphi 0, %s17
      %p14 = scmp.ge.s32.totalorder %s13, 4
      %s23 = sphi 0, %s25
      %s26 = sphi 0, %s23
      %s27 = sphi 0, %s26
      %s43 = sphi 0, %s27
      %s47 = sphi 0, %s47
      %s49 = sphi 0, %s47
      %s50 = sphi 0, %s49
      %s64 = sphi 0, %s50
      %s68 = sphi 0, %s68
      %s70 = sphi 0, %s68
      %s71 = sphi 0, %s70
      %s85 = sphi 0, %s71
      %s91 = sphi 0, %s93
      %s94 = sphi 0, %s91
      %s95 = sphi 0, %s94
      %s111 = sphi 0, %s95
    $region4: #{tpu_custom_call.1} parent=1 // loop_header_branch
      %16 = sbr.rel (%p14) target = $region8
    $region5: #{tpu_custom_call.1} parent=1 // loop_body
      %s18 = ssub.s32 %s13, 1
      %s19 = ssub.s32 %s13, 2
      %s20 = sadd.s32 %s13, 1
      %s21 = ssub.s32 %s13, %s20
      %p22 = scmp.eq.s32.totalorder %s21, 0
      %s24 = sadd.s32 %s23, 1
      %s25 = scalar_select %p22, %s23, %s24
      %p28 = pneg %p22
      %p29 = scmp.eq.s32.totalorder %s13, 1
      %p30 = por %p28, %p29
      %p31 = scmp.ne.s32.totalorder %s23, %s26
      %p32 = scmp.eq.s32.totalorder %s13, 0
      %p33 = por %p31, %p32
      %p34 = scmp.ne.s32.totalorder %s23, %s26
      %p35 = scmp.eq.s32.totalorder %s18, 1
      %p36 = por %p34, %p35
      %p37 = scmp.ne.s32.totalorder %s26, %s27
      %p38 = scmp.eq.s32.totalorder %s18, 0
      %p39 = por %p37, %p38
      %p40 = scmp.ne.s32.totalorder %s26, %s27
      %p41 = scmp.eq.s32.totalorder %s19, 1
      %p42 = por %p40, %p41
      %p44 = scmp.ne.s32.totalorder %s27, %s43
      %p45 = scmp.eq.s32.totalorder %s19, 0
      %p46 = por %p44, %p45
      %s48 = sadd.s32 %s47, 1
      %p51 = scmp.eq.s32.totalorder %s13, 1
      %p52 = scmp.ne.s32.totalorder %s47, %s49
      %p53 = scmp.eq.s32.totalorder %s13, 0
      %p54 = por %p52, %p53
      %p55 = scmp.ne.s32.totalorder %s47, %s49
      %p56 = scmp.eq.s32.totalorder %s18, 1
      %p57 = por %p55, %p56
      %p58 = scmp.ne.s32.totalorder %s49, %s50
      %p59 = scmp.eq.s32.totalorder %s18, 0
      %p60 = por %p58, %p59
      %p61 = scmp.ne.s32.totalorder %s49, %s50
      %p62 = scmp.eq.s32.totalorder %s19, 1
      %p63 = por %p61, %p62
      %p65 = scmp.ne.s32.totalorder %s50, %s64
      %p66 = scmp.eq.s32.totalorder %s19, 0
      %p67 = por %p65, %p66
      %s69 = sadd.s32 %s68, 1
      %p72 = scmp.eq.s32.totalorder %s13, 1
      %p73 = scmp.ne.s32.totalorder %s68, %s70
      %p74 = scmp.eq.s32.totalorder %s13, 0
      %p75 = por %p73, %p74
      %p76 = scmp.ne.s32.totalorder %s68, %s70
      %p77 = scmp.eq.s32.totalorder %s18, 1
      %p78 = por %p76, %p77
      %p79 = scmp.ne.s32.totalorder %s70, %s71
      %p80 = scmp.eq.s32.totalorder %s18, 0
      %p81 = por %p79, %p80
      %p82 = scmp.ne.s32.totalorder %s70, %s71
      %p83 = scmp.eq.s32.totalorder %s19, 1
      %p84 = por %p82, %p83
      %p86 = scmp.ne.s32.totalorder %s71, %s85
      %p87 = scmp.eq.s32.totalorder %s19, 0
      %p88 = por %p86, %p87
      %s89 = ssub.s32 %s13, %s20
      %p90 = scmp.eq.s32.totalorder %s89, 0
      %s92 = sadd.s32 %s91, 1
      %s93 = scalar_select %p90, %s91, %s92
      %p96 = pneg %p90
      %p97 = scmp.eq.s32.totalorder %s13, 1
      %p98 = por %p96, %p97
      %p99 = scmp.ne.s32.totalorder %s91, %s94
      %p100 = scmp.eq.s32.totalorder %s13, 0
      %p101 = por %p99, %p100
      %p102 = scmp.ne.s32.totalorder %s91, %s94
      %p103 = scmp.eq.s32.totalorder %s18, 1
      %p104 = por %p102, %p103
      %p105 = scmp.ne.s32.totalorder %s94, %s95
      %p106 = scmp.eq.s32.totalorder %s18, 0
      %p107 = por %p105, %p106
      %p108 = scmp.ne.s32.totalorder %s94, %s95
      %p109 = scmp.eq.s32.totalorder %s19, 1
      %p110 = por %p108, %p109
      %p112 = scmp.ne.s32.totalorder %s95, %s111
      %p113 = scmp.eq.s32.totalorder %s19, 0
      %p114 = por %p112, %p113
      %p115 = scmp.le.s32.totalorder 1, %s13
      %p116 = scmp.lt.s32.totalorder %s13, 3
      %p117 = pnand %p115, %p116
      %p118 = pneg %p117
      // Predicated region
      $region9: #{tpu_custom_call.1} parent=5 // pred_check
        _
      $region10: #{tpu_custom_call.1} parent=5 // pred_check_branch
        %120 = sbr.rel (%p117) target = $region12
      $region11: #{tpu_custom_call.1} parent=5 // pred_region
        %s121 = ssub.s32 %s13, 1
        // Predicated region
        $region13: #{tpu_custom_call.1} parent=11 // pred_check
          %p122 = pneg %p60
        $region14: #{tpu_custom_call.1} parent=11 // pred_check_branch
          %124 = sbr.rel (%p122) target = $region16
        $region15: #{tpu_custom_call.1} parent=11 // pred_region
          _
        $region16: #{tpu_custom_call.1} parent=11 // pred_fallthru
          _
        // Predicated region
        $region17: #{tpu_custom_call.1} parent=11 // pred_check
          %p125 = pneg %p81
        $region18: #{tpu_custom_call.1} parent=11 // pred_check_branch
          %127 = sbr.rel (%p125) target = $region20
        $region19: #{tpu_custom_call.1} parent=11 // pred_region
          _
        $region20: #{tpu_custom_call.1} parent=11 // pred_fallthru
          _
      $region12: #{tpu_custom_call.1} parent=5 // pred_fallthru
        _
      %p128 = scmp.lt.s32.totalorder %s13, 2
      // Predicated region
      $region21: #{tpu_custom_call.1} parent=5 // pred_check
        %p129 = pneg %p128
      $region22: #{tpu_custom_call.1} parent=5 // pred_check_branch
        %131 = sbr.rel (%p129) target = $region24
      $region23: #{tpu_custom_call.1} parent=5 // pred_region
        // Predicated region
        $region25: #{tpu_custom_call.1} parent=23 // pred_check
          %p132 = pneg %p33
        $region26: #{tpu_custom_call.1} parent=23 // pred_check_branch
          %134 = sbr.rel (%p132) target = $region28
        $region27: #{tpu_custom_call.1} parent=23 // pred_region
          %s135 = smul.u32 128, %s13
          %p136 = scmp.lt.s32.totalorder %s135, 255
          %s137 = scalar_select %p136, %s135, 255
          %s138 = smul.addr %s137, 8
          %s139 = scalar_lea.vmem %s0, %s138
          %s140 = smul.u32 128, %s13
        $region28: #{tpu_custom_call.1} parent=23 // pred_fallthru
          _
      $region24: #{tpu_custom_call.1} parent=5 // pred_fallthru
        _
      %p141 = scmp.le.s32.totalorder 1, %s13
      %p142 = scmp.lt.s32.totalorder %s13, 3
      %p143 = pnand %p141, %p142
      %p144 = pneg %p143
      // Predicated region
      $region29: #{tpu_custom_call.1} parent=5 // pred_check
        _
      $region30: #{tpu_custom_call.1} parent=5 // pred_check_branch
        %146 = sbr.rel (%p143) target = $region32
      $region31: #{tpu_custom_call.1} parent=5 // pred_region
        %s147 = ssub.s32 %s13, 1
        %s148 = smul.u32 128, %s18
        %p149 = scmp.lt.s32.totalorder %s148, 255
        %s150 = scalar_select %p149, %s148, 255
        %s151 = smul.addr %s150, 8
        %s152 = scalar_lea.vmem %s0, %s151
        %p153 = pneg %p39
        %p154 = pneg %p36
        %p155 = pneg %p60
        %p156 = pneg %p57
        %p157 = pneg %p81
        %p158 = pneg %p78
        %p159 = pneg %p107
        %p160 = pneg %p104
        %s161 = sand.u32 %s94, 1
        %s162 = scalar_lea.sflag [#allocation4], %s161
        %s163 = sand.u32 %s94, 1
        %s164 = smul.addr %s163, 8
        %s165 = scalar_lea.vmem [#allocation3], %s164
        %s166 = smul.u32 128, %s18
        %p167 = scmp.lt.s32.totalorder %s166, 255
        %s168 = scalar_select %p167, %s166, 255
        %s169 = smul.addr %s168, 8
        %s170 = scalar_lea.vmem %s0, %s169
        %s171 = smul.u32 128, %s18
        %s172 = smul.u32 8, %s18
        %v173 = vld [vmem:[%s170] sm:$0xff]
        %v174 = vld [vmem:[%s170 + $0x8] sm:$0xff]
        %v175 = vld [vmem:[%s170 + $0x10] sm:$0xff]
        %v176 = vld [vmem:[%s170 + $0x18] sm:$0xff]
        %v177 = vld [vmem:[%s170 + $0x20] sm:$0xff]
        %v178 = vld [vmem:[%s170 + $0x28] sm:$0xff]
        %v179 = vld [vmem:[%s170 + $0x30] sm:$0xff]
        %v180 = vld [vmem:[%s170 + $0x38] sm:$0xff]
        %v181 = vld [vmem:[%s170 + $0x40] sm:$0xff]
        %v182 = vld [vmem:[%s170 + $0x48] sm:$0xff]
        %v183 = vld [vmem:[%s170 + $0x50] sm:$0xff]
        %v184 = vld [vmem:[%s170 + $0x58] sm:$0xff]
        %v185 = vld [vmem:[%s170 + $0x60] sm:$0xff]
        %v186 = vld [vmem:[%s170 + $0x68] sm:$0xff]
        %v187 = vld [vmem:[%s170 + $0x70] sm:$0xff]
        %v188 = vld [vmem:[%s170 + $0x78] sm:$0xff]
        %v189 = vld [vmem:[%s170 + $0x80] sm:$0xff]
        %v190 = vld [vmem:[%s170 + $0x88] sm:$0xff]
        %v191 = vld [vmem:[%s170 + $0x90] sm:$0xff]
        %v192 = vld [vmem:[%s170 + $0x98] sm:$0xff]
        %v193 = vld [vmem:[%s170 + $0xa0] sm:$0xff]
        %v194 = vld [vmem:[%s170 + $0xa8] sm:$0xff]
        %v195 = vld [vmem:[%s170 + $0xb0] sm:$0xff]
        %v196 = vld [vmem:[%s170 + $0xb8] sm:$0xff]
        %v197 = vld [vmem:[%s170 + $0xc0] sm:$0xff]
        %v198 = vld [vmem:[%s170 + $0xc8] sm:$0xff]
        %v199 = vld [vmem:[%s170 + $0xd0] sm:$0xff]
        %v200 = vld [vmem:[%s170 + $0xd8] sm:$0xff]
        %v201 = vld [vmem:[%s170 + $0xe0] sm:$0xff]
        %v202 = vld [vmem:[%s170 + $0xe8] sm:$0xff]
        %v203 = vld [vmem:[%s170 + $0xf0] sm:$0xff]
        %v204 = vld [vmem:[%s170 + $0xf8] sm:$0xff]
        %v205 = vld [vmem:[%s170 + $0x100] sm:$0xff]
        %v206 = vld [vmem:[%s170 + $0x108] sm:$0xff]
        %v207 = vld [vmem:[%s170 + $0x110] sm:$0xff]
        %v208 = vld [vmem:[%s170 + $0x118] sm:$0xff]
        %v209 = vld [vmem:[%s170 + $0x120] sm:$0xff]
        %v210 = vld [vmem:[%s170 + $0x128] sm:$0xff]
        %v211 = vld [vmem:[%s170 + $0x130] sm:$0xff]
        %v212 = vld [vmem:[%s170 + $0x138] sm:$0xff]
        %v213 = vld [vmem:[%s170 + $0x140] sm:$0xff]
        %v214 = vld [vmem:[%s170 + $0x148] sm:$0xff]
        %v215 = vld [vmem:[%s170 + $0x150] sm:$0xff]
        %v216 = vld [vmem:[%s170 + $0x158] sm:$0xff]
        %v217 = vld [vmem:[%s170 + $0x160] sm:$0xff]
        %v218 = vld [vmem:[%s170 + $0x168] sm:$0xff]
        %v219 = vld [vmem:[%s170 + $0x170] sm:$0xff]
        %v220 = vld [vmem:[%s170 + $0x178] sm:$0xff]
        %v221 = vld [vmem:[%s170 + $0x180] sm:$0xff]
        %v222 = vld [vmem:[%s170 + $0x188] sm:$0xff]
        %v223 = vld [vmem:[%s170 + $0x190] sm:$0xff]
        %v224 = vld [vmem:[%s170 + $0x198] sm:$0xff]
        %v225 = vld [vmem:[%s170 + $0x1a0] sm:$0xff]
        %v226 = vld [vmem:[%s170 + $0x1a8] sm:$0xff]
        %v227 = vld [vmem:[%s170 + $0x1b0] sm:$0xff]
        %v228 = vld [vmem:[%s170 + $0x1b8] sm:$0xff]
        %v229 = vld [vmem:[%s170 + $0x1c0] sm:$0xff]
        %v230 = vld [vmem:[%s170 + $0x1c8] sm:$0xff]
        %v231 = vld [vmem:[%s170 + $0x1d0] sm:$0xff]
        %v232 = vld [vmem:[%s170 + $0x1d8] sm:$0xff]
        %v233 = vld [vmem:[%s170 + $0x1e0] sm:$0xff]
        %v234 = vld [vmem:[%s170 + $0x1e8] sm:$0xff]
        %v235 = vld [vmem:[%s170 + $0x1f0] sm:$0xff]
        %v236 = vld [vmem:[%s170 + $0x1f8] sm:$0xff]
        %v237 = vld [vmem:[%s170 + $0x200] sm:$0xff]
        %v238 = vld [vmem:[%s170 + $0x208] sm:$0xff]
        %v239 = vld [vmem:[%s170 + $0x210] sm:$0xff]
        %v240 = vld [vmem:[%s170 + $0x218] sm:$0xff]
        %v241 = vld [vmem:[%s170 + $0x220] sm:$0xff]
        %v242 = vld [vmem:[%s170 + $0x228] sm:$0xff]
        %v243 = vld [vmem:[%s170 + $0x230] sm:$0xff]
        %v244 = vld [vmem:[%s170 + $0x238] sm:$0xff]
        %v245 = vld [vmem:[%s170 + $0x240] sm:$0xff]
        %v246 = vld [vmem:[%s170 + $0x248] sm:$0xff]
        %v247 = vld [vmem:[%s170 + $0x250] sm:$0xff]
        %v248 = vld [vmem:[%s170 + $0x258] sm:$0xff]
        %v249 = vld [vmem:[%s170 + $0x260] sm:$0xff]
        %v250 = vld [vmem:[%s170 + $0x268] sm:$0xff]
        %v251 = vld [vmem:[%s170 + $0x270] sm:$0xff]
        %v252 = vld [vmem:[%s170 + $0x278] sm:$0xff]
        %v253 = vld [vmem:[%s170 + $0x280] sm:$0xff]
        %v254 = vld [vmem:[%s170 + $0x288] sm:$0xff]
        %v255 = vld [vmem:[%s170 + $0x290] sm:$0xff]
        %v256 = vld [vmem:[%s170 + $0x298] sm:$0xff]
        %v257 = vld [vmem:[%s170 + $0x2a0] sm:$0xff]
        %v258 = vld [vmem:[%s170 + $0x2a8] sm:$0xff]
        %v259 = vld [vmem:[%s170 + $0x2b0] sm:$0xff]
        %v260 = vld [vmem:[%s170 + $0x2b8] sm:$0xff]
        %v261 = vld [vmem:[%s170 + $0x2c0] sm:$0xff]
        %v262 = vld [vmem:[%s170 + $0x2c8] sm:$0xff]
        %v263 = vld [vmem:[%s170 + $0x2d0] sm:$0xff]
        %v264 = vld [vmem:[%s170 + $0x2d8] sm:$0xff]
        %v265 = vld [vmem:[%s170 + $0x2e0] sm:$0xff]
        %v266 = vld [vmem:[%s170 + $0x2e8] sm:$0xff]
        %v267 = vld [vmem:[%s170 + $0x2f0] sm:$0xff]
        %v268 = vld [vmem:[%s170 + $0x2f8] sm:$0xff]
        %v269 = vld [vmem:[%s170 + $0x300] sm:$0xff]
        %v270 = vld [vmem:[%s170 + $0x308] sm:$0xff]
        %v271 = vld [vmem:[%s170 + $0x310] sm:$0xff]
        %v272 = vld [vmem:[%s170 + $0x318] sm:$0xff]
        %v273 = vld [vmem:[%s170 + $0x320] sm:$0xff]
        %v274 = vld [vmem:[%s170 + $0x328] sm:$0xff]
        %v275 = vld [vmem:[%s170 + $0x330] sm:$0xff]
        %v276 = vld [vmem:[%s170 + $0x338] sm:$0xff]
        %v277 = vld [vmem:[%s170 + $0x340] sm:$0xff]
        %v278 = vld [vmem:[%s170 + $0x348] sm:$0xff]
        %v279 = vld [vmem:[%s170 + $0x350] sm:$0xff]
        %v280 = vld [vmem:[%s170 + $0x358] sm:$0xff]
        %v281 = vld [vmem:[%s170 + $0x360] sm:$0xff]
        %v282 = vld [vmem:[%s170 + $0x368] sm:$0xff]
        %v283 = vld [vmem:[%s170 + $0x370] sm:$0xff]
        %v284 = vld [vmem:[%s170 + $0x378] sm:$0xff]
        %v285 = vld [vmem:[%s170 + $0x380] sm:$0xff]
        %v286 = vld [vmem:[%s170 + $0x388] sm:$0xff]
        %v287 = vld [vmem:[%s170 + $0x390] sm:$0xff]
        %v288 = vld [vmem:[%s170 + $0x398] sm:$0xff]
        %v289 = vld [vmem:[%s170 + $0x3a0] sm:$0xff]
        %v290 = vld [vmem:[%s170 + $0x3a8] sm:$0xff]
        %v291 = vld [vmem:[%s170 + $0x3b0] sm:$0xff]
        %v292 = vld [vmem:[%s170 + $0x3b8] sm:$0xff]
        %v293 = vld [vmem:[%s170 + $0x3c0] sm:$0xff]
        %v294 = vld [vmem:[%s170 + $0x3c8] sm:$0xff]
        %v295 = vld [vmem:[%s170 + $0x3d0] sm:$0xff]
        %v296 = vld [vmem:[%s170 + $0x3d8] sm:$0xff]
        %v297 = vld [vmem:[%s170 + $0x3e0] sm:$0xff]
        %v298 = vld [vmem:[%s170 + $0x3e8] sm:$0xff]
        %v299 = vld [vmem:[%s170 + $0x3f0] sm:$0xff]
        %v300 = vld [vmem:[%s170 + $0x3f8] sm:$0xff]
        %v301 = vld [vmem:[%s1] sm:$0x1]
        %s302 = sld [smem:[#allocation2]]
        %v303 = vstv %s302
        %vm304 = vcmask 80896
        %v306 = vsel %vm304, %v301, 0
        %v309 = vsel %vm304, %v173, 0
        %v312 = vsel %vm304, %v174, 0
        %v315 = vsel %vm304, %v175, 0
        %v318 = vsel %vm304, %v176, 0
        %v321 = vsel %vm304, %v177, 0
        %v324 = vsel %vm304, %v178, 0
        %v327 = vsel %vm304, %v179, 0
        %v330 = vsel %vm304, %v180, 0
        %v333 = vsel %vm304, %v181, 0
        %v336 = vsel %vm304, %v182, 0
        %v339 = vsel %vm304, %v183, 0
        %v342 = vsel %vm304, %v184, 0
        %v345 = vsel %vm304, %v185, 0
        %v348 = vsel %vm304, %v186, 0
        %v351 = vsel %vm304, %v187, 0
        %v354 = vsel %vm304, %v188, 0
        %v357 = vsel %vm304, %v189, 0
        %v360 = vsel %vm304, %v190, 0
        %v363 = vsel %vm304, %v191, 0
        %v366 = vsel %vm304, %v192, 0
        %v369 = vsel %vm304, %v193, 0
        %v372 = vsel %vm304, %v194, 0
        %v375 = vsel %vm304, %v195, 0
        %v378 = vsel %vm304, %v196, 0
        %v381 = vsel %vm304, %v197, 0
        %v384 = vsel %vm304, %v198, 0
        %v387 = vsel %vm304, %v199, 0
        %v390 = vsel %vm304, %v200, 0
        %v393 = vsel %vm304, %v201, 0
        %v396 = vsel %vm304, %v202, 0
        %v399 = vsel %vm304, %v203, 0
        %v402 = vsel %vm304, %v204, 0
        %v405 = vsel %vm304, %v205, 0
        %v408 = vsel %vm304, %v206, 0
        %v411 = vsel %vm304, %v207, 0
        %v414 = vsel %vm304, %v208, 0
        %v417 = vsel %vm304, %v209, 0
        %v420 = vsel %vm304, %v210, 0
        %v423 = vsel %vm304, %v211, 0
        %v426 = vsel %vm304, %v212, 0
        %v429 = vsel %vm304, %v213, 0
        %v432 = vsel %vm304, %v214, 0
        %v435 = vsel %vm304, %v215, 0
        %v438 = vsel %vm304, %v216, 0
        %v441 = vsel %vm304, %v217, 0
        %v444 = vsel %vm304, %v218, 0
        %v447 = vsel %vm304, %v219, 0
        %v450 = vsel %vm304, %v220, 0
        %v453 = vsel %vm304, %v221, 0
        %v456 = vsel %vm304, %v222, 0
        %v459 = vsel %vm304, %v223, 0
        %v462 = vsel %vm304, %v224, 0
        %v465 = vsel %vm304, %v225, 0
        %v468 = vsel %vm304, %v226, 0
        %v471 = vsel %vm304, %v227, 0
        %v474 = vsel %vm304, %v228, 0
        %v477 = vsel %vm304, %v229, 0
        %v480 = vsel %vm304, %v230, 0
        %v483 = vsel %vm304, %v231, 0
        %v486 = vsel %vm304, %v232, 0
        %v489 = vsel %vm304, %v233, 0
        %v492 = vsel %vm304, %v234, 0
        %v495 = vsel %vm304, %v235, 0
        %v498 = vsel %vm304, %v236, 0
        %v501 = vsel %vm304, %v237, 0
        %v504 = vsel %vm304, %v238, 0
        %v507 = vsel %vm304, %v239, 0
        %v510 = vsel %vm304, %v240, 0
        %v513 = vsel %vm304, %v241, 0
        %v516 = vsel %vm304, %v242, 0
        %v519 = vsel %vm304, %v243, 0
        %v522 = vsel %vm304, %v244, 0
        %v525 = vsel %vm304, %v245, 0
        %v528 = vsel %vm304, %v246, 0
        %v531 = vsel %vm304, %v247, 0
        %v534 = vsel %vm304, %v248, 0
        %v537 = vsel %vm304, %v249, 0
        %v540 = vsel %vm304, %v250, 0
        %v543 = vsel %vm304, %v251, 0
        %v546 = vsel %vm304, %v252, 0
        %v549 = vsel %vm304, %v253, 0
        %v552 = vsel %vm304, %v254, 0
        %v555 = vsel %vm304, %v255, 0
        %v558 = vsel %vm304, %v256, 0
        %v561 = vsel %vm304, %v257, 0
        %v564 = vsel %vm304, %v258, 0
        %v567 = vsel %vm304, %v259, 0
        %v570 = vsel %vm304, %v260, 0
        %v573 = vsel %vm304, %v261, 0
        %v576 = vsel %vm304, %v262, 0
        %v579 = vsel %vm304, %v263, 0
        %v582 = vsel %vm304, %v264, 0
        %v585 = vsel %vm304, %v265, 0
        %v588 = vsel %vm304, %v266, 0
        %v591 = vsel %vm304, %v267, 0
        %v594 = vsel %vm304, %v268, 0
        %v597 = vsel %vm304, %v269, 0
        %v600 = vsel %vm304, %v270, 0
        %v603 = vsel %vm304, %v271, 0
        %v606 = vsel %vm304, %v272, 0
        %v609 = vsel %vm304, %v273, 0
        %v612 = vsel %vm304, %v274, 0
        %v615 = vsel %vm304, %v275, 0
        %v618 = vsel %vm304, %v276, 0
        %v621 = vsel %vm304, %v277, 0
        %v624 = vsel %vm304, %v278, 0
        %v627 = vsel %vm304, %v279, 0
        %v630 = vsel %vm304, %v280, 0
        %v633 = vsel %vm304, %v281, 0
        %v636 = vsel %vm304, %v282, 0
        %v639 = vsel %vm304, %v283, 0
        %v642 = vsel %vm304, %v284, 0
        %v645 = vsel %vm304, %v285, 0
        %v648 = vsel %vm304, %v286, 0
        %v651 = vsel %vm304, %v287, 0
        %v654 = vsel %vm304, %v288, 0
        %v657 = vsel %vm304, %v289, 0
        %v660 = vsel %vm304, %v290, 0
        %v663 = vsel %vm304, %v291, 0
        %v666 = vsel %vm304, %v292, 0
        %v669 = vsel %vm304, %v293, 0
        %v672 = vsel %vm304, %v294, 0
        %v675 = vsel %vm304, %v295, 0
        %v678 = vsel %vm304, %v296, 0
        %v681 = vsel %vm304, %v297, 0
        %v684 = vsel %vm304, %v298, 0
        %v687 = vsel %vm304, %v299, 0
        %v690 = vsel %vm304, %v300, 0
        %692 = vmatpush.xpose.msra.mxu0 %v354
        %693 = vmatpush.xpose.msra.mxu0 %v351
        %694 = vmatpush.xpose.msra.mxu0 %v348
        %695 = vmatpush.xpose.msra.mxu0 %v345
        %696 = vmatpush.xpose.msra.mxu0 %v342
        %697 = vmatpush.xpose.msra.mxu0 %v339
        %698 = vmatpush.xpose.msra.mxu0 %v336
        %699 = vmatpush.xpose.msra.mxu0 %v333
        %700 = vmatpush.xpose.msra.mxu0 %v330
        %701 = vmatpush.xpose.msra.mxu0 %v327
        %702 = vmatpush.xpose.msra.mxu0 %v324
        %703 = vmatpush.xpose.msra.mxu0 %v321
        %704 = vmatpush.xpose.msra.mxu0 %v318
        %705 = vmatpush.xpose.msra.mxu0 %v315
        %706 = vmatpush.xpose.msra.mxu0 %v312
        %707 = vmatpush.xpose.msra.mxu0 %v309
        %708 = vmatmul.f32.gmra.mxu0 %v306
        %v709 = vpop.f32.mrf.mxu0
        %v710 = vadd.f32 %v303, %v709
        %711 = vdwg.mxu0
        %712 = vmatpush.xpose.msra.mxu0 %v402
        %713 = vmatpush.xpose.msra.mxu0 %v399
        %714 = vmatpush.xpose.msra.mxu0 %v396
        %715 = vmatpush.xpose.msra.mxu0 %v393
        %716 = vmatpush.xpose.msra.mxu0 %v390
        %717 = vmatpush.xpose.msra.mxu0 %v387
        %718 = vmatpush.xpose.msra.mxu0 %v384
        %719 = vmatpush.xpose.msra.mxu0 %v381
        %720 = vmatpush.xpose.msra.mxu0 %v378
        %721 = vmatpush.xpose.msra.mxu0 %v375
        %722 = vmatpush.xpose.msra.mxu0 %v372
        %723 = vmatpush.xpose.msra.mxu0 %v369
        %724 = vmatpush.xpose.msra.mxu0 %v366
        %725 = vmatpush.xpose.msra.mxu0 %v363
        %726 = vmatpush.xpose.msra.mxu0 %v360
        %727 = vmatpush.xpose.msra.mxu0 %v357
        %728 = vmatmul.f32.gmra.mxu0 %v306
        %v729 = vpop.f32.mrf.mxu0
        %v730 = vadd.f32 %v303, %v729
        %731 = vdwg.mxu0
        %732 = vmatpush.xpose.msra.mxu0 %v450
        %733 = vmatpush.xpose.msra.mxu0 %v447
        %734 = vmatpush.xpose.msra.mxu0 %v444
        %735 = vmatpush.xpose.msra.mxu0 %v441
        %736 = vmatpush.xpose.msra.mxu0 %v438
        %737 = vmatpush.xpose.msra.mxu0 %v435
        %738 = vmatpush.xpose.msra.mxu0 %v432
        %739 = vmatpush.xpose.msra.mxu0 %v429
        %740 = vmatpush.xpose.msra.mxu0 %v426
        %741 = vmatpush.xpose.msra.mxu0 %v423
        %742 = vmatpush.xpose.msra.mxu0 %v420
        %743 = vmatpush.xpose.msra.mxu0 %v417
        %744 = vmatpush.xpose.msra.mxu0 %v414
        %745 = vmatpush.xpose.msra.mxu0 %v411
        %746 = vmatpush.xpose.msra.mxu0 %v408
        %747 = vmatpush.xpose.msra.mxu0 %v405
        %748 = vmatmul.f32.gmra.mxu0 %v306
        %v749 = vpop.f32.mrf.mxu0
        %v750 = vadd.f32 %v303, %v749
        %751 = vdwg.mxu0
        %752 = vmatpush.xpose.msra.mxu0 %v498
        %753 = vmatpush.xpose.msra.mxu0 %v495
        %754 = vmatpush.xpose.msra.mxu0 %v492
        %755 = vmatpush.xpose.msra.mxu0 %v489
        %756 = vmatpush.xpose.msra.mxu0 %v486
        %757 = vmatpush.xpose.msra.mxu0 %v483
        %758 = vmatpush.xpose.msra.mxu0 %v480
        %759 = vmatpush.xpose.msra.mxu0 %v477
        %760 = vmatpush.xpose.msra.mxu0 %v474
        %761 = vmatpush.xpose.msra.mxu0 %v471
        %762 = vmatpush.xpose.msra.mxu0 %v468
        %763 = vmatpush.xpose.msra.mxu0 %v465
        %764 = vmatpush.xpose.msra.mxu0 %v462
        %765 = vmatpush.xpose.msra.mxu0 %v459
        %766 = vmatpush.xpose.msra.mxu0 %v456
        %767 = vmatpush.xpose.msra.mxu0 %v453
        %768 = vmatmul.f32.gmra.mxu0 %v306
        %v769 = vpop.f32.mrf.mxu0
        %v770 = vadd.f32 %v303, %v769
        %771 = vdwg.mxu0
        %772 = vmatpush.xpose.msra.mxu0 %v546
        %773 = vmatpush.xpose.msra.mxu0 %v543
        %774 = vmatpush.xpose.msra.mxu0 %v540
        %775 = vmatpush.xpose.msra.mxu0 %v537
        %776 = vmatpush.xpose.msra.mxu0 %v534
        %777 = vmatpush.xpose.msra.mxu0 %v531
        %778 = vmatpush.xpose.msra.mxu0 %v528
        %779 = vmatpush.xpose.msra.mxu0 %v525
        %780 = vmatpush.xpose.msra.mxu0 %v522
        %781 = vmatpush.xpose.msra.mxu0 %v519
        %782 = vmatpush.xpose.msra.mxu0 %v516
        %783 = vmatpush.xpose.msra.mxu0 %v513
        %784 = vmatpush.xpose.msra.mxu0 %v510
        %785 = vmatpush.xpose.msra.mxu0 %v507
        %786 = vmatpush.xpose.msra.mxu0 %v504
        %787 = vmatpush.xpose.msra.mxu0 %v501
        %788 = vmatmul.f32.gmra.mxu0 %v306
        %v789 = vpop.f32.mrf.mxu0
        %v790 = vadd.f32 %v303, %v789
        %791 = vdwg.mxu0
        %792 = vmatpush.xpose.msra.mxu0 %v594
        %793 = vmatpush.xpose.msra.mxu0 %v591
        %794 = vmatpush.xpose.msra.mxu0 %v588
        %795 = vmatpush.xpose.msra.mxu0 %v585
        %796 = vmatpush.xpose.msra.mxu0 %v582
        %797 = vmatpush.xpose.msra.mxu0 %v579
        %798 = vmatpush.xpose.msra.mxu0 %v576
        %799 = vmatpush.xpose.msra.mxu0 %v573
        %800 = vmatpush.xpose.msra.mxu0 %v570
        %801 = vmatpush.xpose.msra.mxu0 %v567
        %802 = vmatpush.xpose.msra.mxu0 %v564
        %803 = vmatpush.xpose.msra.mxu0 %v561
        %804 = vmatpush.xpose.msra.mxu0 %v558
        %805 = vmatpush.xpose.msra.mxu0 %v555
        %806 = vmatpush.xpose.msra.mxu0 %v552
        %807 = vmatpush.xpose.msra.mxu0 %v549
        %808 = vmatmul.f32.gmra.mxu0 %v306
        %v809 = vpop.f32.mrf.mxu0
        %v810 = vadd.f32 %v303, %v809
        %811 = vdwg.mxu0
        %812 = vmatpush.xpose.msra.mxu0 %v642
        %813 = vmatpush.xpose.msra.mxu0 %v639
        %814 = vmatpush.xpose.msra.mxu0 %v636
        %815 = vmatpush.xpose.msra.mxu0 %v633
        %816 = vmatpush.xpose.msra.mxu0 %v630
        %817 = vmatpush.xpose.msra.mxu0 %v627
        %818 = vmatpush.xpose.msra.mxu0 %v624
        %819 = vmatpush.xpose.msra.mxu0 %v621
        %820 = vmatpush.xpose.msra.mxu0 %v618
        %821 = vmatpush.xpose.msra.mxu0 %v615
        %822 = vmatpush.xpose.msra.mxu0 %v612
        %823 = vmatpush.xpose.msra.mxu0 %v609
        %824 = vmatpush.xpose.msra.mxu0 %v606
        %825 = vmatpush.xpose.msra.mxu0 %v603
        %826 = vmatpush.xpose.msra.mxu0 %v600
        %827 = vmatpush.xpose.msra.mxu0 %v597
        %828 = vmatmul.f32.gmra.mxu0 %v306
        %v829 = vpop.f32.mrf.mxu0
        %v830 = vadd.f32 %v303, %v829
        %831 = vdwg.mxu0
        %832 = vmatpush.xpose.msra.mxu0 %v690
        %833 = vmatpush.xpose.msra.mxu0 %v687
        %834 = vmatpush.xpose.msra.mxu0 %v684
        %835 = vmatpush.xpose.msra.mxu0 %v681
        %836 = vmatpush.xpose.msra.mxu0 %v678
        %837 = vmatpush.xpose.msra.mxu0 %v675
        %838 = vmatpush.xpose.msra.mxu0 %v672
        %839 = vmatpush.xpose.msra.mxu0 %v669
        %840 = vmatpush.xpose.msra.mxu0 %v666
        %841 = vmatpush.xpose.msra.mxu0 %v663
        %842 = vmatpush.xpose.msra.mxu0 %v660
        %843 = vmatpush.xpose.msra.mxu0 %v657
        %844 = vmatpush.xpose.msra.mxu0 %v654
        %845 = vmatpush.xpose.msra.mxu0 %v651
        %846 = vmatpush.xpose.msra.mxu0 %v648
        %847 = vmatpush.xpose.msra.mxu0 %v645
        %848 = vmatmul.f32.gmra.mxu0 %v306
        %v849 = vpop.f32.mrf.mxu0
        %v850 = vadd.f32 %v303, %v849
        %851 = vdwg.mxu0
        %v860 = vrot.slane %v730, 7
        %v861 = vrot.slane %v750, 6
        %v862 = vrot.slane %v770, 5
        %v863 = vrot.slane %v790, 4
        %v864 = vrot.slane %v810, 3
        %v865 = vrot.slane %v830, 2
        %v866 = vrot.slane %v850, 1
        %vm867 = vcmask 1040384
        %v868 = vsel %vm867, %v710, %v860
        %vm869 = vcmask 1042434
        %v870 = vsel %vm869, %v861, %v862
        %vm871 = vcmask 1041408
        %v872 = vsel %vm871, %v868, %v870
        %vm873 = vcmask 1044484
        %v874 = vsel %vm873, %v863, %v864
        %vm875 = vcmask 1046534
        %v876 = vsel %vm875, %v865, %v866
        %vm877 = vcmask 1045508
        %v878 = vsel %vm877, %v874, %v876
        %vm879 = vcmask 1043456
        %v880 = vsel %vm879, %v872, %v878
        %882 = vst [vmem:[%s165] sm:$0xff] %v880
        %s883 = sand.u32 %s94, 1
        %s884 = scalar_lea.sflag [#allocation4], %s883
        %s885 = sand.u32 %s94, 1
        %s886 = smul.addr %s885, 8
        %s887 = scalar_lea.vmem [#allocation3], %s886
        // Predicated region
        $region33: #{tpu_custom_call.1} parent=31 // pred_check
          %p888 = pneg %p104
        $region34: #{tpu_custom_call.1} parent=31 // pred_check_branch
          %890 = sbr.rel (%p888) target = $region36
        $region35: #{tpu_custom_call.1} parent=31 // pred_region
          %s891 = smul.u32 8, %s18
          %893 = vsyncadd %s884, 0
          %s894 = scalar_lea.hbm %s3, %s891
          %s896 = sshll.u32 %s887, 4
          %s897 = int_to_ptr.vmem [resolvable:$true] %s896
          %s898 = sshll.u32 %s894, 4
          %s899 = int_to_ptr.hbm [resolvable:$true] %s898
          %901 = dma.vmem_to_hbm [thread:$0]  %s897, 128, %s899, %s884
        $region36: #{tpu_custom_call.1} parent=31 // pred_fallthru
          _
      $region32: #{tpu_custom_call.1} parent=5 // pred_fallthru
        _
      %p902 = scmp.le.s32.totalorder 2, %s13
      // Predicated region
      $region37: #{tpu_custom_call.1} parent=5 // pred_check
        %p903 = pneg %p902
      $region38: #{tpu_custom_call.1} parent=5 // pred_check_branch
        %905 = sbr.rel (%p903) target = $region40
      $region39: #{tpu_custom_call.1} parent=5 // pred_region
        %s906 = ssub.s32 %s13, 2
        // Predicated region
        $region41: #{tpu_custom_call.1} parent=39 // pred_check
          %p907 = pneg %p110
        $region42: #{tpu_custom_call.1} parent=39 // pred_check_branch
          %909 = sbr.rel (%p907) target = $region44
        $region43: #{tpu_custom_call.1} parent=39 // pred_region
          %s910 = sand.u32 %s95, 1
          %s911 = scalar_lea.sflag [#allocation4], %s910
          %s912 = sand.u32 %s95, 1
          %s913 = smul.addr %s912, 8
          %s914 = scalar_lea.vmem [#allocation3], %s913
          %916 = dma.done %s911, 128
        $region44: #{tpu_custom_call.1} parent=39 // pred_fallthru
          _
      $region40: #{tpu_custom_call.1} parent=5 // pred_fallthru
        _
    $region6: #{tpu_custom_call.1} parent=1 // loop_footer
      %s17 = sadd.s32 1, %s13
    $region7: #{tpu_custom_call.1} parent=1 // loop_footer_branch
      %12 = sbr.rel target = $region3
    $region8: #{tpu_custom_call.1} parent=1 // loop_exit
      _
    %917 = vsyncpa [#allocation4], 1
    %s918 = scalar_lea.sflag [#allocation4], 1
    %919 = vsyncpa %s918, 1

</llo_original>
